<compile_context>
chip_gen: v7x
topology: tpu7x:2x2x1
jax: 0.10.0
libtpu: 0.0.40
codegen_flags: <defaults>
</compile_context>

<pallas_src>
import jax
import jax.numpy as jnp
from jax.experimental import pallas as pl
from jax.experimental.pallas import tpu as pltpu

EPS = 1e-6


def sublayer_connection_kernel(x_ref, w_ref, bias_ref, o_ref):
    x = x_ref[...].astype(jnp.float32)                      # (TM, D)
    d = x.shape[-1]

    # --- LayerNorm statistics (two-pass, torch unbiased std) ---
    mean = jnp.sum(x, axis=-1, keepdims=True) * (1.0 / d)
    centered = x - mean
    var_unbiased = jnp.sum(centered * centered, axis=-1, keepdims=True) * (
        1.0 / (d - 1))
    std = jnp.sqrt(var_unbiased)
    inv = pl.reciprocal(std + EPS, approx=False)             # EUP, not VALU
    normed = centered * inv                                   # a_2/b_2 folded into W/bias

    # --- sublayer: Linear(D, D) on the MXU (bf16 operands, f32 accumulate) ---
    y = jnp.dot(normed.astype(jnp.bfloat16), w_ref[...],
                preferred_element_type=jnp.float32)
    y = y + bias_ref[...]

    # --- dropout (eval mode => identity) + residual ---
    o_ref[...] = (x + y).astype(o_ref.dtype)


def sublayer_connection(x, a2, b2, w, bias, *, tile_m=1024):
    """x: (B, S, D); a2, b2, bias: (D,); w: (D, D). Returns (B, S, D)."""
    B, S, D = x.shape
    rows = B * S
    x2 = x.reshape(rows, D)

    # Fold LayerNorm affine (a_2, b_2) into the Linear:
    #   (a2*z + b2) @ W + bias == z @ (a2[:,None]*W) + (b2 @ W + bias)
    w_f32 = w.astype(jnp.float32)
    w_folded = (a2.astype(jnp.float32)[:, None] * w_f32).astype(jnp.bfloat16)
    bias_folded = (b2.astype(jnp.float32) @ w_f32
                   + bias.astype(jnp.float32)).reshape(1, D)

    # Row-tile sizing: multiple of 8 sublanes, capped at tile_m.  No padding:
    # the grid uses cdiv and Pallas masks the partial last block (per-row
    # stats => garbage OOB rows are harmless, OOB writes are dropped).
    rows_p8 = ((rows + 7) // 8) * 8
    tm = min(tile_m, rows_p8)
    # v7x has 2 TensorCores: make sure the "parallel" axis has >= 2 steps
    # whenever there is enough work to split (no-op on v5e/v6e correctness).
    if rows > 8 and pl.cdiv(rows, tm) < 2:
        tm = max(8, ((pl.cdiv(rows, 2) + 7) // 8) * 8)

    grid = (pl.cdiv(rows, tm),)

    out = pl.pallas_call(
        sublayer_connection_kernel,
        out_shape=jax.ShapeDtypeStruct((rows, D), x.dtype),
        grid_spec=pltpu.PrefetchScalarGridSpec(
            num_scalar_prefetch=0,
            grid=grid,
            in_specs=[
                pl.BlockSpec((tm, D), lambda i: (i, 0)),      # x tile
                pl.BlockSpec((D, D), lambda i: (0, 0),        # folded W (bf16)
                             pipeline_mode=pl.Buffered(1)),
                pl.BlockSpec((1, D), lambda i: (0, 0),        # folded bias (f32)
                             pipeline_mode=pl.Buffered(1)),
            ],
            out_specs=pl.BlockSpec((tm, D), lambda i: (i, 0)),
        ),
        compiler_params=pltpu.CompilerParams(
            dimension_semantics=("parallel",),
        ),
    )(x2, w_folded, bias_folded)

    return out.reshape(B, S, D)


if __name__ == "__main__":
    B, S, D = 2, 8, 128  # size = D = 128 features

    key = jax.random.PRNGKey(0)
    kx, kw, kb = jax.random.split(key, 3)

    x = jax.random.normal(kx, (B, S, D), dtype=jnp.float32)

    # LayerNorm params exactly as in __init__: ones / zeros.
    a2 = jnp.ones((D,), dtype=jnp.float32)
    b2 = jnp.zeros((D,), dtype=jnp.float32)

    # Deterministic "sublayer" Linear(D, D) parameters.
    w = jax.random.normal(kw, (D, D), dtype=jnp.float32) * 0.02
    bias = jax.random.normal(kb, (D,), dtype=jnp.float32) * 0.02

    out = sublayer_connection(x, a2, b2, w, bias)
    out = jax.block_until_ready(out)

    # Correctness check against pure-JAX reference (torch semantics, full f32).
    mean = jnp.mean(x, axis=-1, keepdims=True)
    cen = x - mean
    std = jnp.sqrt(jnp.sum(cen * cen, axis=-1, keepdims=True) / (D - 1))
    normed = a2 * cen / (std + EPS) + b2
    ref = x + (jnp.einsum("bsd,de->bse", normed, w) + bias)
    # bf16 matmul operands => slightly looser tolerance than pure f32.
    assert jnp.allclose(out, ref, atol=1e-2, rtol=1e-2), (
        float(jnp.max(jnp.abs(out - ref))))

    print("KERNEL_OK")
</pallas_src>

<mosaic_0001>
module attributes {stable_mosaic.version = 11 : i64} {
  func.func @sublayer_connection_kernel(%arg0: i32, %arg1: memref<8x128xf32, #tpu.memory_space<vmem>>, %arg2: memref<128x128xbf16, #tpu.memory_space<vmem>>, %arg3: memref<1x128xf32, #tpu.memory_space<vmem>>, %arg4: memref<8x128xf32, #tpu.memory_space<vmem>>) attributes {dimension_semantics = [#tpu.dimension_semantics<parallel>], iteration_bounds = array<i64: 2>, scalar_prefetch = 0 : i64, scratch_operands = 0 : i64, tpu.core_type = #tpu.core_type<tc>, window_params = [{transform_indices = @transform_0, window_bounds = array<i64: 8, 128>}, {pipeline_mode = #tpu.pipeline_mode<synchronous>, transform_indices = @transform_1, window_bounds = array<i64: 128, 128>}, {pipeline_mode = #tpu.pipeline_mode<synchronous>, transform_indices = @transform_2, window_bounds = array<i64: 1, 128>}, {transform_indices = @transform_3, window_bounds = array<i64: 8, 128>}]} {
    %c0 = arith.constant 0 : index
    %c0_0 = arith.constant 0 : index
    %0 = vector.load %arg1[%c0, %c0_0] : memref<8x128xf32, #tpu.memory_space<vmem>>, vector<8x128xf32>
    %cst = arith.constant dense<0.000000e+00> : vector<8xf32>
    %1 = vector.multi_reduction <add>, %0, %cst [1] : vector<8x128xf32> to vector<8xf32>
    %2 = vector.shape_cast %1 : vector<8xf32> to vector<8x1xf32>
    %cst_1 = arith.constant 7.812500e-03 : f32
    %3 = vector.broadcast %cst_1 : f32 to vector<8x1xf32>
    %4 = arith.mulf %2, %3 : vector<8x1xf32>
    %5 = vector.broadcast %4 : vector<8x1xf32> to vector<8x128xf32>
    %6 = arith.subf %0, %5 : vector<8x128xf32>
    %7 = arith.mulf %6, %6 : vector<8x128xf32>
    %cst_2 = arith.constant dense<0.000000e+00> : vector<8xf32>
    %8 = vector.multi_reduction <add>, %7, %cst_2 [1] : vector<8x128xf32> to vector<8xf32>
    %9 = vector.shape_cast %8 : vector<8xf32> to vector<8x1xf32>
    %cst_3 = arith.constant 0.00787401571 : f32
    %10 = vector.broadcast %cst_3 : f32 to vector<8x1xf32>
    %11 = arith.mulf %9, %10 : vector<8x1xf32>
    %12 = math.sqrt %11 : vector<8x1xf32>
    %cst_4 = arith.constant 9.99999997E-7 : f32
    %13 = vector.broadcast %cst_4 : f32 to vector<8x1xf32>
    %14 = arith.addf %12, %13 : vector<8x1xf32>
    %15 = tpu.reciprocal %14 : vector<8x1xf32> -> vector<8x1xf32>
    %16 = vector.broadcast %15 : vector<8x1xf32> to vector<8x128xf32>
    %17 = arith.mulf %6, %16 : vector<8x128xf32>
    %18 = arith.truncf %17 : vector<8x128xf32> to vector<8x128xbf16>
    %c0_5 = arith.constant 0 : index
    %c0_6 = arith.constant 0 : index
    %19 = vector.load %arg2[%c0_5, %c0_6] : memref<128x128xbf16, #tpu.memory_space<vmem>>, vector<128x128xbf16>
    %cst_7 = arith.constant dense<0.000000e+00> : vector<8x128xf32>
    %20 = tpu.matmul %18, %19, %cst_7 {dimension_numbers = #tpu.dot_dimension_numbers<[1], [0], [0], [1], [0, 0, 1, 1], [], []>} : vector<8x128xbf16>, vector<128x128xbf16>, vector<8x128xf32> -> vector<8x128xf32>
    %c0_8 = arith.constant 0 : index
    %c0_9 = arith.constant 0 : index
    %21 = vector.load %arg3[%c0_8, %c0_9] : memref<1x128xf32, #tpu.memory_space<vmem>>, vector<1x128xf32>
    %22 = vector.broadcast %21 : vector<1x128xf32> to vector<8x128xf32>
    %23 = arith.addf %20, %22 : vector<8x128xf32>
    %24 = arith.addf %0, %23 : vector<8x128xf32>
    %c0_10 = arith.constant 0 : index
    %c0_11 = arith.constant 0 : index
    %25 = vector.load %arg4[%c0_10, %c0_11] : memref<8x128xf32, #tpu.memory_space<vmem>>, vector<8x128xf32>
    tpu.vector_store %arg4[%c0_10, %c0_11], %24 {strides = array<i32>} : memref<8x128xf32, #tpu.memory_space<vmem>>, vector<8x128xf32>,
    return
  }
  func.func @transform_0(%arg0: i32) -> (i32, i32) {
    %c0_i32 = arith.constant 0 : i32
    %c0_i32_0 = arith.constant 0 : i32
    return %arg0, %c0_i32 : i32, i32
  }
  func.func @transform_1(%arg0: i32) -> (i32, i32) {
    %c0_i32 = arith.constant 0 : i32
    %c0_i32_0 = arith.constant 0 : i32
    %c0_i32_1 = arith.constant 0 : i32
    return %c0_i32, %c0_i32_0 : i32, i32
  }
  func.func @transform_2(%arg0: i32) -> (i32, i32) {
    %c0_i32 = arith.constant 0 : i32
    %c0_i32_0 = arith.constant 0 : i32
    %c0_i32_1 = arith.constant 0 : i32
    return %c0_i32, %c0_i32_0 : i32, i32
  }
  func.func @transform_3(%arg0: i32) -> (i32, i32) {
    %c0_i32 = arith.constant 0 : i32
    %c0_i32_0 = arith.constant 0 : i32
    return %arg0, %c0_i32 : i32, i32
  }
}

</mosaic_0001>

<llo_original>
// kernel: tpu_custom_call.1
$region0: #{tpu_custom_call.1}
  #allocation0 [shape = 'u32[]', space=smem, size = 0x4, offset = 0x4, fixed_abs, tag = 'smem constant byte address 0x4 - core index']
  #allocation1 [shape = 'u32[144,128]{1,0:T(1,128)}', space=vmem, size = 0x12000, scoped, tag = 'internal scratch']
  %s0 = inlined_call_operand.hbm [shape: f32[16,128], index: 0, kind: input, shape index: {}]
  %s1 = inlined_call_operand.hbm [shape: bf16[128,128], index: 1, kind: input, shape index: {}]
  %s2 = inlined_call_operand.vmem [shape: f32[1,128], index: 2, kind: input, shape index: {}]
  %s3 = inlined_call_operand.hbm [shape: f32[16,128], index: 3, kind: output, shape index: {}]
  %s4 = sld [smem:[#allocation0]]
  $region53: #{tpu_custom_call.1} parent=0
    _
  %s6 = ssub.s32 1, %s4
  %s7 = scalar_select 0, %s6, %s4
  $region1: #{tpu_custom_call.1} parent=0
    #allocation2 [shape = 'u8[8192]{0}', space=vmem, size = 0x2000, scoped, tag = 'input window, operand 0']
    #allocation3 [shape = 's32[2]{0}', space=sflag, size = 0x8, scoped, tag = 'scoped memory for tpu_custom_call.1']
    #allocation4 [shape = 's32[2]{0}', space=sflag, size = 0x8, scoped, tag = 'scoped memory for tpu_custom_call.1']
    #allocation5 [shape = 'u8[32768]{0}', space=vmem, size = 0x8000, scoped, tag = 'input window, operand 1, single buffered']
    #allocation6 [shape = 's32[1]{0}', space=sflag, size = 0x4, scoped, tag = 'scoped memory for tpu_custom_call.1']
    #allocation7 [shape = 'u8[8192]{0}', space=vmem, size = 0x2000, scoped, tag = 'output window, operand 0']
    %8 = vsyncpa [#allocation3], 0
    %s9 = scalar_lea.sflag [#allocation3], 1
    %10 = vsyncpa %s9, 0
    %11 = vsyncpa [#allocation6], 0
    %12 = vsyncpa [#allocation4], 0
    %s13 = scalar_lea.sflag [#allocation4], 1
    %14 = vsyncpa %s13, 0
    loop: start=0, step=1, limit=4
    $region2: #{tpu_custom_call.1} parent=1 // loop_pre_header
      _
    $region3: #{tpu_custom_call.1} parent=1 // loop_header
      %s16 = sphi 0, %s20
      %p17 = scmp.ge.s32.totalorder %s16, 4
      %s26 = sphi 0, %s28
      %s29 = sphi 0, %s26
      %s30 = sphi 0, %s29
      %s46 = sphi 0, %s30
      %s50 = sphi 0, %s50
      %s52 = sphi 0, %s50
      %s53 = sphi 0, %s52
      %s67 = sphi 0, %s53
      %s71 = sphi 0, %s71
      %s73 = sphi 0, %s71
      %s74 = sphi 0, %s73
      %s88 = sphi 0, %s74
      %s94 = sphi 0, %s96
      %s97 = sphi 0, %s94
      %s98 = sphi 0, %s97
      %s114 = sphi 0, %s98
    $region4: #{tpu_custom_call.1} parent=1 // loop_header_branch
      %19 = sbr.rel (%p17) target = $region8
    $region5: #{tpu_custom_call.1} parent=1 // loop_body
      %s21 = ssub.s32 %s16, 1
      %s22 = ssub.s32 %s16, 2
      %s23 = sadd.s32 %s16, 1
      %s24 = ssub.s32 %s16, %s23
      %p25 = scmp.eq.s32.totalorder %s24, 0
      %s27 = sadd.s32 %s26, 1
      %s28 = scalar_select %p25, %s26, %s27
      %p31 = pneg %p25
      %p32 = scmp.eq.s32.totalorder %s16, 1
      %p33 = por %p31, %p32
      %p34 = scmp.ne.s32.totalorder %s26, %s29
      %p35 = scmp.eq.s32.totalorder %s16, 0
      %p36 = por %p34, %p35
      %p37 = scmp.ne.s32.totalorder %s26, %s29
      %p38 = scmp.eq.s32.totalorder %s21, 1
      %p39 = por %p37, %p38
      %p40 = scmp.ne.s32.totalorder %s29, %s30
      %p41 = scmp.eq.s32.totalorder %s21, 0
      %p42 = por %p40, %p41
      %p43 = scmp.ne.s32.totalorder %s29, %s30
      %p44 = scmp.eq.s32.totalorder %s22, 1
      %p45 = por %p43, %p44
      %p47 = scmp.ne.s32.totalorder %s30, %s46
      %p48 = scmp.eq.s32.totalorder %s22, 0
      %p49 = por %p47, %p48
      %s51 = sadd.s32 %s50, 1
      %p54 = scmp.eq.s32.totalorder %s16, 1
      %p55 = scmp.ne.s32.totalorder %s50, %s52
      %p56 = scmp.eq.s32.totalorder %s16, 0
      %p57 = por %p55, %p56
      %p58 = scmp.ne.s32.totalorder %s50, %s52
      %p59 = scmp.eq.s32.totalorder %s21, 1
      %p60 = por %p58, %p59
      %p61 = scmp.ne.s32.totalorder %s52, %s53
      %p62 = scmp.eq.s32.totalorder %s21, 0
      %p63 = por %p61, %p62
      %p64 = scmp.ne.s32.totalorder %s52, %s53
      %p65 = scmp.eq.s32.totalorder %s22, 1
      %p66 = por %p64, %p65
      %p68 = scmp.ne.s32.totalorder %s53, %s67
      %p69 = scmp.eq.s32.totalorder %s22, 0
      %p70 = por %p68, %p69
      %s72 = sadd.s32 %s71, 1
      %p75 = scmp.eq.s32.totalorder %s16, 1
      %p76 = scmp.ne.s32.totalorder %s71, %s73
      %p77 = scmp.eq.s32.totalorder %s16, 0
      %p78 = por %p76, %p77
      %p79 = scmp.ne.s32.totalorder %s71, %s73
      %p80 = scmp.eq.s32.totalorder %s21, 1
      %p81 = por %p79, %p80
      %p82 = scmp.ne.s32.totalorder %s73, %s74
      %p83 = scmp.eq.s32.totalorder %s21, 0
      %p84 = por %p82, %p83
      %p85 = scmp.ne.s32.totalorder %s73, %s74
      %p86 = scmp.eq.s32.totalorder %s22, 1
      %p87 = por %p85, %p86
      %p89 = scmp.ne.s32.totalorder %s74, %s88
      %p90 = scmp.eq.s32.totalorder %s22, 0
      %p91 = por %p89, %p90
      %s92 = ssub.s32 %s16, %s23
      %p93 = scmp.eq.s32.totalorder %s92, 0
      %s95 = sadd.s32 %s94, 1
      %s96 = scalar_select %p93, %s94, %s95
      %p99 = pneg %p93
      %p100 = scmp.eq.s32.totalorder %s16, 1
      %p101 = por %p99, %p100
      %p102 = scmp.ne.s32.totalorder %s94, %s97
      %p103 = scmp.eq.s32.totalorder %s16, 0
      %p104 = por %p102, %p103
      %p105 = scmp.ne.s32.totalorder %s94, %s97
      %p106 = scmp.eq.s32.totalorder %s21, 1
      %p107 = por %p105, %p106
      %p108 = scmp.ne.s32.totalorder %s97, %s98
      %p109 = scmp.eq.s32.totalorder %s21, 0
      %p110 = por %p108, %p109
      %p111 = scmp.ne.s32.totalorder %s97, %s98
      %p112 = scmp.eq.s32.totalorder %s22, 1
      %p113 = por %p111, %p112
      %p115 = scmp.ne.s32.totalorder %s98, %s114
      %p116 = scmp.eq.s32.totalorder %s22, 0
      %p117 = por %p115, %p116
      %p118 = scmp.le.s32.totalorder 1, %s16
      %p119 = scmp.lt.s32.totalorder %s16, 3
      %p120 = pnand %p118, %p119
      %p121 = pneg %p120
      // Predicated region
      $region9: #{tpu_custom_call.1} parent=5 // pred_check
        _
      $region10: #{tpu_custom_call.1} parent=5 // pred_check_branch
        %123 = sbr.rel (%p120) target = $region12
      $region11: #{tpu_custom_call.1} parent=5 // pred_region
        %s124 = ssub.s32 %s16, 1
        // Predicated region
        $region13: #{tpu_custom_call.1} parent=11 // pred_check
          %p125 = pneg %p63
        $region14: #{tpu_custom_call.1} parent=11 // pred_check_branch
          %127 = sbr.rel (%p125) target = $region16
        $region15: #{tpu_custom_call.1} parent=11 // pred_region
          %s129 = ssub.s32 1024, 1024
          %130 = vsyncadd [#allocation6], %s129
          %s131 = sshll.u32 [#allocation5], 4
          %s132 = int_to_ptr.vmem [resolvable:$true] %s131
          %137 = dma.hbm_to_vmem [thread:$0]  %s1, 1024, %s132, [#allocation6], 64, 64, 4
        $region16: #{tpu_custom_call.1} parent=11 // pred_fallthru
          _
        // Predicated region
        $region17: #{tpu_custom_call.1} parent=11 // pred_check
          %p138 = pneg %p84
        $region18: #{tpu_custom_call.1} parent=11 // pred_check_branch
          %140 = sbr.rel (%p138) target = $region20
        $region19: #{tpu_custom_call.1} parent=11 // pred_region
          _
        $region20: #{tpu_custom_call.1} parent=11 // pred_fallthru
          _
      $region12: #{tpu_custom_call.1} parent=5 // pred_fallthru
        _
      %p141 = scmp.lt.s32.totalorder %s16, 2
      // Predicated region
      $region21: #{tpu_custom_call.1} parent=5 // pred_check
        %p142 = pneg %p141
      $region22: #{tpu_custom_call.1} parent=5 // pred_check_branch
        %144 = sbr.rel (%p142) target = $region24
      $region23: #{tpu_custom_call.1} parent=5 // pred_region
        // Predicated region
        $region25: #{tpu_custom_call.1} parent=23 // pred_check
          %p145 = pneg %p36
        $region26: #{tpu_custom_call.1} parent=23 // pred_check_branch
          %147 = sbr.rel (%p145) target = $region28
        $region27: #{tpu_custom_call.1} parent=23 // pred_region
          %s148 = sand.u32 %s26, 1
          %s149 = scalar_lea.sflag [#allocation3], %s148
          %s150 = sand.u32 %s26, 1
          %s151 = smul.addr %s150, 8
          %s152 = scalar_lea.vmem [#allocation2], %s151
          %s154 = ssub.s32 128, 128
          %155 = vsyncadd %s149, %s154
          %s156 = smul.addr %s16, 128
          %s157 = scalar_lea.hbm %s0, %s156
          %s159 = sshll.u32 %s152, 4
          %s160 = int_to_ptr.vmem [resolvable:$true] %s159
          %162 = dma.hbm_to_vmem [thread:$0]  %s157, 128, %s160, %s149
        $region28: #{tpu_custom_call.1} parent=23 // pred_fallthru
          _
      $region24: #{tpu_custom_call.1} parent=5 // pred_fallthru
        _
      %p163 = scmp.le.s32.totalorder 1, %s16
      %p164 = scmp.lt.s32.totalorder %s16, 3
      %p165 = pnand %p163, %p164
      %p166 = pneg %p165
      // Predicated region
      $region29: #{tpu_custom_call.1} parent=5 // pred_check
        _
      $region30: #{tpu_custom_call.1} parent=5 // pred_check_branch
        %168 = sbr.rel (%p165) target = $region32
      $region31: #{tpu_custom_call.1} parent=5 // pred_region
        %s169 = ssub.s32 %s16, 1
        %s170 = sand.u32 %s29, 1
        %s171 = scalar_lea.sflag [#allocation3], %s170
        %s172 = sand.u32 %s29, 1
        %s173 = smul.addr %s172, 8
        %s174 = scalar_lea.vmem [#allocation2], %s173
        // Predicated region
        $region33: #{tpu_custom_call.1} parent=31 // pred_check
          %p175 = pneg %p42
        $region34: #{tpu_custom_call.1} parent=31 // pred_check_branch
          %177 = sbr.rel (%p175) target = $region36
        $region35: #{tpu_custom_call.1} parent=31 // pred_region
          %178 = dma.done %s171, 128
        $region36: #{tpu_custom_call.1} parent=31 // pred_fallthru
          _
        // Predicated region
        $region37: #{tpu_custom_call.1} parent=31 // pred_check
          %p179 = pneg %p63
        $region38: #{tpu_custom_call.1} parent=31 // pred_check_branch
          %181 = sbr.rel (%p179) target = $region40
        $region39: #{tpu_custom_call.1} parent=31 // pred_region
          %182 = dma.done [#allocation6], 1024
        $region40: #{tpu_custom_call.1} parent=31 // pred_fallthru
          _
        %s183 = sand.u32 %s29, 1
        %s184 = scalar_lea.sflag [#allocation3], %s183
        %s185 = sand.u32 %s29, 1
        %s186 = smul.addr %s185, 8
        %s187 = scalar_lea.vmem [#allocation2], %s186
        %p188 = pneg %p42
        %p189 = pneg %p39
        %p190 = pneg %p63
        %p191 = pneg %p60
        %p192 = pneg %p84
        %p193 = pneg %p81
        %p194 = pneg %p110
        %p195 = pneg %p107
        %s196 = sand.u32 %s97, 1
        %s197 = scalar_lea.sflag [#allocation4], %s196
        %s198 = sand.u32 %s97, 1
        %s199 = smul.addr %s198, 8
        %s200 = scalar_lea.vmem [#allocation7], %s199
        %v202 = vld [vmem:[%s174] sm:$0xff]
        %203 = vadd.xlane.f32.xlu0 %v202
        %v204 = vpop.xlane.xlu0 %203
        %v205 = vmul.f32 %v204, 0.0078125
        %v206 = vsub.f32 %v202, %v205
        %v207 = vmul.f32 %v206, %v206
        %208 = vadd.xlane.f32.xlu0 %v207
        %v209 = vpop.xlane.xlu0 %208
        %v210 = vmul.f32 %v209, 0.007874016
        %v211 = vrsqrt.pop %v210
        %v212 = vmul.f32 %v210, %v211
        %vm213 = vcmp.eq.f32.partialorder %v210, inf
        %v214 = vsel %vm213, %v210, %v212
        %vm215 = vcmp.eq.f32.partialorder %v210, 0.0
        %v216 = vand.u32 %v210, 2147483648
        %v217 = vsel %vm215, %v216, %v214
        %v218 = vadd.f32 %v217, 1e-06
        %v219 = vrcp.pop %v218
        %v220 = vmul.f32 %v206, %v219
        %v221 = vpack.c.bf16 %v220, %v220
        %v222 = vld [vmem:[#allocation5] sm:$0xf]
        %v223 = vld [vmem:[#allocation5 + $0x4] sm:$0xf]
        %v224 = vld [vmem:[#allocation5 + $0x8] sm:$0xf]
        %v225 = vld [vmem:[#allocation5 + $0xc] sm:$0xf]
        %v226 = vld [vmem:[#allocation5 + $0x10] sm:$0xf]
        %v227 = vld [vmem:[#allocation5 + $0x14] sm:$0xf]
        %v228 = vld [vmem:[#allocation5 + $0x18] sm:$0xf]
        %v229 = vld [vmem:[#allocation5 + $0x1c] sm:$0xf]
        %v230 = vld [vmem:[#allocation5 + $0x20] sm:$0xf]
        %v231 = vld [vmem:[#allocation5 + $0x24] sm:$0xf]
        %v232 = vld [vmem:[#allocation5 + $0x28] sm:$0xf]
        %v233 = vld [vmem:[#allocation5 + $0x2c] sm:$0xf]
        %v234 = vld [vmem:[#allocation5 + $0x30] sm:$0xf]
        %v235 = vld [vmem:[#allocation5 + $0x34] sm:$0xf]
        %v236 = vld [vmem:[#allocation5 + $0x38] sm:$0xf]
        %v237 = vld [vmem:[#allocation5 + $0x3c] sm:$0xf]
        %v238 = vld [vmem:[%s2] sm:$0x1]
        %v240 = vlaneseq
        %v241 = vshrl.u32 %v240, 7
        %v242 = vsub.s32 0, %v241
        %v243 = vrot.slane %v238, %v242
        %v261 = vunpack.c.l.b16 %v222
        %v262 = vunpack.c.l.b16 %v223
        %v263 = vunpack.c.l.b16 %v224
        %v264 = vunpack.c.l.b16 %v225
        %v265 = vunpack.c.l.b16 %v226
        %v266 = vunpack.c.l.b16 %v227
        %v267 = vunpack.c.l.b16 %v228
        %v268 = vunpack.c.l.b16 %v229
        %v269 = vunpack.c.l.b16 %v230
        %v270 = vunpack.c.l.b16 %v231
        %v271 = vunpack.c.l.b16 %v232
        %v272 = vunpack.c.l.b16 %v233
        %v273 = vunpack.c.l.b16 %v234
        %v274 = vunpack.c.l.b16 %v235
        %v275 = vunpack.c.l.b16 %v236
        %v276 = vunpack.c.l.b16 %v237
        %v277 = vpack.c.b16 %v262, %v261
        %v278 = vpack.c.b16 %v264, %v263
        %v279 = vpack.c.b16 %v266, %v265
        %v280 = vpack.c.b16 %v268, %v267
        %v281 = vpack.c.b16 %v270, %v269
        %v282 = vpack.c.b16 %v272, %v271
        %v283 = vpack.c.b16 %v274, %v273
        %v284 = vpack.c.b16 %v276, %v275
        %293 = vmatprep.subr.bf16.mxu0 0
        %294 = vmatpush1.bf16.msra.mxu0 %v277
        %295 = vmatprep.subr.bf16.mxu0 0
        %296 = vmatpush1.bf16.msra.mxu0 %v278
        %297 = vmatprep.subr.bf16.mxu0 0
        %298 = vmatpush1.bf16.msra.mxu0 %v279
        %299 = vmatprep.subr.bf16.mxu0 0
        %300 = vmatpush1.bf16.msra.mxu0 %v280
        %301 = vmatprep.subr.bf16.mxu0 0
        %302 = vmatpush1.bf16.msra.mxu0 %v281
        %303 = vmatprep.subr.bf16.mxu0 0
        %304 = vmatpush1.bf16.msra.mxu0 %v282
        %305 = vmatprep.subr.bf16.mxu0 0
        %306 = vmatpush1.bf16.msra.mxu0 %v283
        %307 = vmatprep.subr.bf16.mxu0 0
        %308 = vmatpush1.bf16.msra.mxu0 %v284
        %309 = vmatprep.subr.bf16.mxu0 0
        %310 = vmatpush1.bf16.msra.mxu0 0
        %311 = vmatprep.subr.bf16.mxu0 0
        %312 = vmatpush1.bf16.msra.mxu0 0
        %313 = vmatprep.subr.bf16.mxu0 0
        %314 = vmatpush1.bf16.msra.mxu0 0
        %315 = vmatprep.subr.bf16.mxu0 0
        %316 = vmatpush1.bf16.msra.mxu0 0
        %317 = vmatprep.subr.bf16.mxu0 0
        %318 = vmatpush1.bf16.msra.mxu0 0
        %319 = vmatprep.subr.bf16.mxu0 0
        %320 = vmatpush1.bf16.msra.mxu0 0
        %321 = vmatprep.subr.bf16.mxu0 0
        %322 = vmatpush1.bf16.msra.mxu0 0
        %323 = vmatprep.subr.bf16.mxu0 0
        %324 = vmatpush1.bf16.msra.mxu0 0
        %325 = vmatprep.mubr.bf16.mxu0 0
        %326 = vmatmul.mubr.bf16.gmra.mrb[0].mxu0 %v221
        %v327 = vpop.f32.mrb[0].mxu0
        %v328 = vadd.f32 %v243, %v327
        %v329 = vpop.f32.mrb[0].mxu0
        %v330 = vpop.f32.mrb[0].mxu0
        %v331 = vpop.f32.mrb[0].mxu0
        %332 = vdwg.mxu0
        %v333 = vadd.f32 %v202, %v328
        %334 = vst [vmem:[%s200] sm:$0xff] %v333
        %s335 = sand.u32 %s97, 1
        %s336 = scalar_lea.sflag [#allocation4], %s335
        %s337 = sand.u32 %s97, 1
        %s338 = smul.addr %s337, 8
        %s339 = scalar_lea.vmem [#allocation7], %s338
        // Predicated region
        $region41: #{tpu_custom_call.1} parent=31 // pred_check
          %p340 = pneg %p107
        $region42: #{tpu_custom_call.1} parent=31 // pred_check_branch
          %342 = sbr.rel (%p340) target = $region44
        $region43: #{tpu_custom_call.1} parent=31 // pred_region
          %s344 = ssub.s32 128, 128
          %345 = vsyncadd %s336, %s344
          %s346 = smul.addr %s21, 128
          %s347 = scalar_lea.hbm %s3, %s346
          %s349 = sshll.u32 %s339, 4
          %s350 = int_to_ptr.vmem [resolvable:$true] %s349
          %352 = dma.vmem_to_hbm [thread:$0]  %s350, 128, %s347, %s336
        $region44: #{tpu_custom_call.1} parent=31 // pred_fallthru
          _
      $region32: #{tpu_custom_call.1} parent=5 // pred_fallthru
        _
      %p353 = scmp.le.s32.totalorder 2, %s16
      // Predicated region
      $region45: #{tpu_custom_call.1} parent=5 // pred_check
        %p354 = pneg %p353
      $region46: #{tpu_custom_call.1} parent=5 // pred_check_branch
        %356 = sbr.rel (%p354) target = $region48
      $region47: #{tpu_custom_call.1} parent=5 // pred_region
        %s357 = ssub.s32 %s16, 2
        // Predicated region
        $region49: #{tpu_custom_call.1} parent=47 // pred_check
          %p358 = pneg %p113
        $region50: #{tpu_custom_call.1} parent=47 // pred_check_branch
          %360 = sbr.rel (%p358) target = $region52
        $region51: #{tpu_custom_call.1} parent=47 // pred_region
          %s361 = sand.u32 %s98, 1
          %s362 = scalar_lea.sflag [#allocation4], %s361
          %s363 = sand.u32 %s98, 1
          %s364 = smul.addr %s363, 8
          %s365 = scalar_lea.vmem [#allocation7], %s364
          %366 = dma.done %s362, 128
        $region52: #{tpu_custom_call.1} parent=47 // pred_fallthru
          _
      $region48: #{tpu_custom_call.1} parent=5 // pred_fallthru
        _
    $region6: #{tpu_custom_call.1} parent=1 // loop_footer
      %s20 = sadd.s32 1, %s16
    $region7: #{tpu_custom_call.1} parent=1 // loop_footer_branch
      %15 = sbr.rel target = $region3
    $region8: #{tpu_custom_call.1} parent=1 // loop_exit
      _
    %367 = vsyncpa [#allocation3], 1
    %s368 = scalar_lea.sflag [#allocation3], 1
    %369 = vsyncpa %s368, 1
    %370 = vsyncpa [#allocation6], 1
    %371 = vsyncpa [#allocation4], 1
    %s372 = scalar_lea.sflag [#allocation4], 1
    %373 = vsyncpa %s372, 1

</llo_original>
